<compile_context>
chip_gen: v7x
topology: tpu7x:2x2x1
jax: 0.10.0
libtpu: 0.0.40
codegen_flags: <defaults>
</compile_context>

<pallas_src>
import functools

import jax
import jax.numpy as jnp
from jax import lax
from jax.experimental import pallas as pl
from jax.experimental.pallas import tpu as pltpu


def double_attention_kernel(x_ref, w_abv_ref, b_abv_ref, wr_ref, br_ref,
                            o_ref, *, c_m, c_n):
    # x_ref: (Cin, N) for one batch element (batch dim squeezed by BlockSpec).
    x = x_ref[...]

    # Fused 1x1 projections: single MXU matmul -> (c_m + 2*c_n, N).
    proj = jnp.dot(w_abv_ref[...], x,
                   preferred_element_type=jnp.float32) + b_abv_ref[...]

    # Slices stay sublane-aligned because c_m and c_n are multiples of 8.
    A  = proj[:c_m, :]                 # (c_m, N)
    Bm = proj[c_m:c_m + c_n, :]        # (c_n, N)
    Vm = proj[c_m + c_n:, :]           # (c_n, N)

    # Softmax over the channel (sublane) axis == PyTorch softmax(dim=1).
    def channel_softmax(t):
        t = jnp.exp(t - jnp.max(t, axis=0, keepdims=True))
        s = jnp.sum(t, axis=0, keepdims=True)            # (1, N)
        return t * pl.reciprocal(s, approx=False)        # cheap (1, N) recip,
                                                         # broadcast multiply
    Bm = channel_softmax(Bm)
    Vm = channel_softmax(Vm)

    # Global descriptors: (c_m, c_n) = A @ Bm^T  (contract over N).
    gd = lax.dot_general(A, Bm, (((1,), (1,)), ((), ())),
                         preferred_element_type=jnp.float32)

    # tmpZ: (c_m, N) = gd @ Vm  — plain matmul, lane-dense (N-wide) output.
    Z = jnp.dot(gd, Vm, preferred_element_type=jnp.float32)

    # 1x1 reconstruct conv back to in_channels: (Cin, N).
    o_ref[...] = (jnp.dot(wr_ref[...], Z, preferred_element_type=jnp.float32)
                  + br_ref[...])


def double_attention(x_nchw, wa, ba, wb, bb, wv, bv, wr, br):
    """x_nchw: (B, Cin, H, W) f32.

    Conv weights in PyTorch layout (out_channels, in_channels); biases (out,).
    """
    b, cin, h, w = x_nchw.shape
    n = h * w
    c_m = wa.shape[0]
    c_n = wb.shape[0]
    c_abv = c_m + 2 * c_n

    # NCHW -> (B, Cin, N): pure reshape, no transpose / extra HBM traffic.
    x = x_nchw.reshape(b, cin, n)

    # Pack the three projection convs into one weight / bias.
    w_abv = jnp.concatenate([wa, wb, wv], axis=0)             # (c_abv, Cin)
    b_abv = jnp.concatenate([ba, bb, bv]).reshape(c_abv, 1)   # (c_abv, 1)
    br2 = br.reshape(cin, 1)                                  # (Cin, 1)

    full = lambda shape: pl.BlockSpec(shape, lambda i: tuple(0 for _ in shape))

    flops = 2 * b * n * (c_abv * cin + 2 * c_m * c_n + cin * c_m)
    bytes_accessed = 4 * (2 * x.size + w_abv.size + b_abv.size
                          + wr.size + br2.size)

    # NOTE: at large N one would add a second ("arbitrary") grid axis tiling N
    # and accumulate gd in VMEM scratch (v7x has only 64 MiB VMEM); at these
    # sizes a whole batch element fits comfortably, so one step per batch.
    out = pl.pallas_call(
        functools.partial(double_attention_kernel, c_m=c_m, c_n=c_n),
        out_shape=jax.ShapeDtypeStruct((b, cin, n), jnp.float32),
        grid_spec=pltpu.PrefetchScalarGridSpec(
            num_scalar_prefetch=0,
            grid=(b,),
            in_specs=[
                pl.BlockSpec((None, cin, n), lambda i: (i, 0, 0)),  # x
                full((c_abv, cin)), full((c_abv, 1)),               # fused proj W/b
                full((cin, c_m)), full((cin, 1)),                   # reconstruct W/b
            ],
            out_specs=pl.BlockSpec((None, cin, n), lambda i: (i, 0, 0)),
        ),
        compiler_params=pltpu.CompilerParams(
            dimension_semantics=("parallel",)),
        cost_estimate=pl.CostEstimate(
            flops=flops,
            transcendentals=2 * b * c_n * n,
            bytes_accessed=bytes_accessed),
    )(x, w_abv, b_abv, wr, br2)

    # (B, Cin, N) -> NCHW: pure reshape.
    return out.reshape(b, cin, h, w)


def _reference(x_nchw, wa, ba, wb, bb, wv, bv, wr, br):
    """Pure-JAX replica of the PyTorch forward for validation."""
    b, cin, h, w = x_nchw.shape
    n = h * w
    x = x_nchw.reshape(b, cin, n)                                        # (b, Cin, N)
    A = jnp.einsum('oc,bcn->bon', wa, x) + ba[:, None]                   # (b, c_m, N)
    B = jax.nn.softmax(jnp.einsum('oc,bcn->bon', wb, x) + bb[:, None], axis=1)
    V = jax.nn.softmax(jnp.einsum('oc,bcn->bon', wv, x) + bv[:, None], axis=1)
    gd = jnp.einsum('bmn,bcn->bmc', A, B)                                # (b, c_m, c_n)
    Z = jnp.einsum('bmc,bcn->bmn', gd, V)                                # (b, c_m, N)
    out = jnp.einsum('oc,bcn->bon', wr, Z) + br[:, None]                 # (b, Cin, N)
    return out.reshape(b, cin, h, w)


if __name__ == "__main__":
    # Small, PyTorch-consistent shapes (c_m, c_n multiples of 8; N mult. of 128).
    batch, in_channels, h, w = 2, 32, 16, 16
    c_m, c_n = 32, 16

    key = jax.random.PRNGKey(0)
    kx, ka, kb, kv, kr = jax.random.split(key, 5)

    x = jax.random.normal(kx, (batch, in_channels, h, w), dtype=jnp.float32)

    # Kaiming-normal (mode='fan_out') for 1x1 convs: std = sqrt(2 / out_channels).
    # Weights in PyTorch layout (out_channels, in_channels); biases zero.
    wa = jax.random.normal(ka, (c_m, in_channels), jnp.float32) * jnp.sqrt(2.0 / c_m)
    wb = jax.random.normal(kb, (c_n, in_channels), jnp.float32) * jnp.sqrt(2.0 / c_n)
    wv = jax.random.normal(kv, (c_n, in_channels), jnp.float32) * jnp.sqrt(2.0 / c_n)
    wr = jax.random.normal(kr, (in_channels, c_m), jnp.float32) * jnp.sqrt(2.0 / in_channels)
    ba = jnp.zeros((c_m,), jnp.float32)
    bb = jnp.zeros((c_n,), jnp.float32)
    bv = jnp.zeros((c_n,), jnp.float32)
    br = jnp.zeros((in_channels,), jnp.float32)

    out = double_attention(x, wa, ba, wb, bb, wv, bv, wr, br)
    out = jax.block_until_ready(out)

    ref = _reference(x, wa, ba, wb, bb, wv, bv, wr, br)
    assert out.shape == (batch, in_channels, h, w)
    assert jnp.allclose(out, ref, atol=1e-4, rtol=1e-4), "mismatch vs reference"

    print("KERNEL_OK")
</pallas_src>

<mosaic_0001>
module attributes {stable_mosaic.version = 11 : i64} {
  func.func @double_attention_kernel(%arg0: i32, %arg1: memref<1x32x256xf32, #tpu.memory_space<vmem>>, %arg2: memref<64x32xf32, #tpu.memory_space<vmem>>, %arg3: memref<64x1xf32, #tpu.memory_space<vmem>>, %arg4: memref<32x32xf32, #tpu.memory_space<vmem>>, %arg5: memref<32x1xf32, #tpu.memory_space<vmem>>, %arg6: memref<1x32x256xf32, #tpu.memory_space<vmem>>) attributes {dimension_semantics = [#tpu.dimension_semantics<parallel>], iteration_bounds = array<i64: 2>, scalar_prefetch = 0 : i64, scratch_operands = 0 : i64, tpu.core_type = #tpu.core_type<tc>, window_params = [{transform_indices = @transform_0, window_bounds = array<i64: 1, 32, 256>}, {pipeline_mode = #tpu.pipeline_mode<synchronous>, transform_indices = @transform_1, window_bounds = array<i64: 64, 32>}, {pipeline_mode = #tpu.pipeline_mode<synchronous>, transform_indices = @transform_2, window_bounds = array<i64: 64, 1>}, {pipeline_mode = #tpu.pipeline_mode<synchronous>, transform_indices = @transform_3, window_bounds = array<i64: 32, 32>}, {pipeline_mode = #tpu.pipeline_mode<synchronous>, transform_indices = @transform_4, window_bounds = array<i64: 32, 1>}, {transform_indices = @transform_5, window_bounds = array<i64: 1, 32, 256>}]} {
    %c0 = arith.constant 0 : index
    %c0_0 = arith.constant 0 : index
    %c0_1 = arith.constant 0 : index
    %0 = vector.load %arg1[%c0, %c0_0, %c0_1] : memref<1x32x256xf32, #tpu.memory_space<vmem>>, vector<1x32x256xf32>
    %1 = vector.shape_cast %0 : vector<1x32x256xf32> to vector<32x256xf32>
    %c0_2 = arith.constant 0 : index
    %c0_3 = arith.constant 0 : index
    %2 = vector.load %arg2[%c0_2, %c0_3] : memref<64x32xf32, #tpu.memory_space<vmem>>, vector<64x32xf32>
    %cst = arith.constant dense<0.000000e+00> : vector<64x256xf32>
    %3 = tpu.matmul %2, %1, %cst {dimension_numbers = #tpu.dot_dimension_numbers<[1], [0], [0], [1], [0, 0, 1, 1], [], []>} : vector<64x32xf32>, vector<32x256xf32>, vector<64x256xf32> -> vector<64x256xf32>
    %c0_4 = arith.constant 0 : index
    %c0_5 = arith.constant 0 : index
    %4 = vector.load %arg3[%c0_4, %c0_5] : memref<64x1xf32, #tpu.memory_space<vmem>>, vector<64x1xf32>
    %5 = vector.broadcast %4 : vector<64x1xf32> to vector<64x256xf32>
    %6 = arith.addf %3, %5 : vector<64x256xf32>
    %7 = vector.extract_strided_slice %6 {offsets = [0, 0], sizes = [32, 256], strides = [1, 1]} : vector<64x256xf32> to vector<32x256xf32>
    %8 = vector.extract_strided_slice %6 {offsets = [32, 0], sizes = [16, 256], strides = [1, 1]} : vector<64x256xf32> to vector<16x256xf32>
    %9 = vector.extract_strided_slice %6 {offsets = [48, 0], sizes = [16, 256], strides = [1, 1]} : vector<64x256xf32> to vector<16x256xf32>
    %cst_6 = arith.constant dense<0xFF800000> : vector<256xf32>
    %10 = vector.multi_reduction <maximumf>, %8, %cst_6 [0] : vector<16x256xf32> to vector<256xf32>
    %11 = vector.shape_cast %10 : vector<256xf32> to vector<1x256xf32>
    %12 = vector.broadcast %11 : vector<1x256xf32> to vector<16x256xf32>
    %13 = arith.subf %8, %12 : vector<16x256xf32>
    %14 = math.exp %13 : vector<16x256xf32>
    %cst_7 = arith.constant dense<0.000000e+00> : vector<256xf32>
    %15 = vector.multi_reduction <add>, %14, %cst_7 [0] : vector<16x256xf32> to vector<256xf32>
    %16 = vector.shape_cast %15 : vector<256xf32> to vector<1x256xf32>
    %17 = tpu.reciprocal %16 : vector<1x256xf32> -> vector<1x256xf32>
    %18 = vector.broadcast %17 : vector<1x256xf32> to vector<16x256xf32>
    %19 = arith.mulf %14, %18 : vector<16x256xf32>
    %cst_8 = arith.constant dense<0xFF800000> : vector<256xf32>
    %20 = vector.multi_reduction <maximumf>, %9, %cst_8 [0] : vector<16x256xf32> to vector<256xf32>
    %21 = vector.shape_cast %20 : vector<256xf32> to vector<1x256xf32>
    %22 = vector.broadcast %21 : vector<1x256xf32> to vector<16x256xf32>
    %23 = arith.subf %9, %22 : vector<16x256xf32>
    %24 = math.exp %23 : vector<16x256xf32>
    %cst_9 = arith.constant dense<0.000000e+00> : vector<256xf32>
    %25 = vector.multi_reduction <add>, %24, %cst_9 [0] : vector<16x256xf32> to vector<256xf32>
    %26 = vector.shape_cast %25 : vector<256xf32> to vector<1x256xf32>
    %27 = tpu.reciprocal %26 : vector<1x256xf32> -> vector<1x256xf32>
    %28 = vector.broadcast %27 : vector<1x256xf32> to vector<16x256xf32>
    %29 = arith.mulf %24, %28 : vector<16x256xf32>
    %cst_10 = arith.constant dense<0.000000e+00> : vector<32x16xf32>
    %30 = tpu.matmul %7, %19, %cst_10 {dimension_numbers = #tpu.dot_dimension_numbers<[1], [1], [0], [0], [0, 0, 1, 0], [], []>} : vector<32x256xf32>, vector<16x256xf32>, vector<32x16xf32> -> vector<32x16xf32>
    %cst_11 = arith.constant dense<0.000000e+00> : vector<32x256xf32>
    %31 = tpu.matmul %30, %29, %cst_11 {dimension_numbers = #tpu.dot_dimension_numbers<[1], [0], [0], [1], [0, 0, 1, 1], [], []>} : vector<32x16xf32>, vector<16x256xf32>, vector<32x256xf32> -> vector<32x256xf32>
    %c0_12 = arith.constant 0 : index
    %c0_13 = arith.constant 0 : index
    %32 = vector.load %arg4[%c0_12, %c0_13] : memref<32x32xf32, #tpu.memory_space<vmem>>, vector<32x32xf32>
    %cst_14 = arith.constant dense<0.000000e+00> : vector<32x256xf32>
    %33 = tpu.matmul %32, %31, %cst_14 {dimension_numbers = #tpu.dot_dimension_numbers<[1], [0], [0], [1], [0, 0, 1, 1], [], []>} : vector<32x32xf32>, vector<32x256xf32>, vector<32x256xf32> -> vector<32x256xf32>
    %c0_15 = arith.constant 0 : index
    %c0_16 = arith.constant 0 : index
    %34 = vector.load %arg5[%c0_15, %c0_16] : memref<32x1xf32, #tpu.memory_space<vmem>>, vector<32x1xf32>
    %35 = vector.broadcast %34 : vector<32x1xf32> to vector<32x256xf32>
    %36 = arith.addf %33, %35 : vector<32x256xf32>
    %c0_17 = arith.constant 0 : index
    %c0_18 = arith.constant 0 : index
    %c0_19 = arith.constant 0 : index
    %37 = vector.load %arg6[%c0_17, %c0_18, %c0_19] : memref<1x32x256xf32, #tpu.memory_space<vmem>>, vector<1x32x256xf32>
    %38 = vector.shape_cast %37 : vector<1x32x256xf32> to vector<32x256xf32>
    %39 = vector.shape_cast %36 : vector<32x256xf32> to vector<1x32x256xf32>
    tpu.vector_store %arg6[%c0_17, %c0_18, %c0_19], %39 {strides = array<i32>} : memref<1x32x256xf32, #tpu.memory_space<vmem>>, vector<1x32x256xf32>,
    return
  }
  func.func @transform_0(%arg0: i32) -> (i32, i32, i32) {
    %c0_i32 = arith.constant 0 : i32
    %c0_i32_0 = arith.constant 0 : i32
    %c0_i32_1 = arith.constant 0 : i32
    return %arg0, %c0_i32, %c0_i32_0 : i32, i32, i32
  }
  func.func @transform_1(%arg0: i32) -> (i32, i32) {
    %c0_i32 = arith.constant 0 : i32
    %c0_i32_0 = arith.constant 0 : i32
    %c0_i32_1 = arith.constant 0 : i32
    return %c0_i32, %c0_i32_0 : i32, i32
  }
  func.func @transform_2(%arg0: i32) -> (i32, i32) {
    %c0_i32 = arith.constant 0 : i32
    %c0_i32_0 = arith.constant 0 : i32
    %c0_i32_1 = arith.constant 0 : i32
    return %c0_i32, %c0_i32_0 : i32, i32
  }
  func.func @transform_3(%arg0: i32) -> (i32, i32) {
    %c0_i32 = arith.constant 0 : i32
    %c0_i32_0 = arith.constant 0 : i32
    %c0_i32_1 = arith.constant 0 : i32
    return %c0_i32, %c0_i32_0 : i32, i32
  }
  func.func @transform_4(%arg0: i32) -> (i32, i32) {
    %c0_i32 = arith.constant 0 : i32
    %c0_i32_0 = arith.constant 0 : i32
    %c0_i32_1 = arith.constant 0 : i32
    return %c0_i32, %c0_i32_0 : i32, i32
  }
  func.func @transform_5(%arg0: i32) -> (i32, i32, i32) {
    %c0_i32 = arith.constant 0 : i32
    %c0_i32_0 = arith.constant 0 : i32
    %c0_i32_1 = arith.constant 0 : i32
    return %arg0, %c0_i32, %c0_i32_0 : i32, i32, i32
  }
}

</mosaic_0001>

<llo_original>
// kernel: tpu_custom_call.1
$region0: #{tpu_custom_call.1}
  #allocation0 [shape = 'u32[]', space=smem, size = 0x4, offset = 0x4, fixed_abs, tag = 'smem constant byte address 0x4 - core index']
  #allocation1 [shape = 'u32[144,128]{1,0:T(1,128)}', space=vmem, size = 0x12000, scoped, tag = 'internal scratch']
  %s0 = inlined_call_operand.vmem [shape: f32[2,32,256], index: 0, kind: input, shape index: {}]
  %s1 = inlined_call_operand.vmem [shape: f32[64,32], index: 1, kind: input, shape index: {}]
  %s2 = inlined_call_operand.vmem [shape: f32[64,1], index: 2, kind: input, shape index: {}]
  %s3 = inlined_call_operand.vmem [shape: f32[32,32], index: 3, kind: input, shape index: {}]
  %s4 = inlined_call_operand.vmem [shape: f32[32,1], index: 4, kind: input, shape index: {}]
  %s5 = inlined_call_operand.hbm [shape: f32[2,32,256], index: 5, kind: output, shape index: {}]
  %s6 = sld [smem:[#allocation0]]
  $region53: #{tpu_custom_call.1} parent=0
    _
  %s8 = ssub.s32 1, %s6
  %s9 = scalar_select 0, %s8, %s6
  $region1: #{tpu_custom_call.1} parent=0
    #allocation2 [shape = 'u8[65536]{0}', space=vmem, size = 0x10000, scoped, tag = 'output window, operand 0']
    #allocation3 [shape = 's32[2]{0}', space=sflag, size = 0x8, scoped, tag = 'scoped memory for tpu_custom_call.1']
    %10 = vsyncpa [#allocation3], 0
    %s11 = scalar_lea.sflag [#allocation3], 1
    %12 = vsyncpa %s11, 0
    loop: start=0, step=1, limit=4
    $region2: #{tpu_custom_call.1} parent=1 // loop_pre_header
      _
    $region3: #{tpu_custom_call.1} parent=1 // loop_header
      %s14 = sphi 0, %s18
      %p15 = scmp.ge.s32.totalorder %s14, 4
      %s24 = sphi 0, %s26
      %s27 = sphi 0, %s24
      %s28 = sphi 0, %s27
      %s44 = sphi 0, %s28
      %s48 = sphi 0, %s48
      %s50 = sphi 0, %s48
      %s51 = sphi 0, %s50
      %s65 = sphi 0, %s51
      %s69 = sphi 0, %s69
      %s71 = sphi 0, %s69
      %s72 = sphi 0, %s71
      %s86 = sphi 0, %s72
      %s90 = sphi 0, %s90
      %s92 = sphi 0, %s90
      %s93 = sphi 0, %s92
      %s107 = sphi 0, %s93
      %s111 = sphi 0, %s111
      %s113 = sphi 0, %s111
      %s114 = sphi 0, %s113
      %s128 = sphi 0, %s114
      %s134 = sphi 0, %s136
      %s137 = sphi 0, %s134
      %s138 = sphi 0, %s137
      %s154 = sphi 0, %s138
    $region4: #{tpu_custom_call.1} parent=1 // loop_header_branch
      %17 = sbr.rel (%p15) target = $region8
    $region5: #{tpu_custom_call.1} parent=1 // loop_body
      %s19 = ssub.s32 %s14, 1
      %s20 = ssub.s32 %s14, 2
      %s21 = sadd.s32 %s14, 1
      %s22 = ssub.s32 %s14, %s21
      %p23 = scmp.eq.s32.totalorder %s22, 0
      %s25 = sadd.s32 %s24, 1
      %s26 = scalar_select %p23, %s24, %s25
      %p29 = pneg %p23
      %p30 = scmp.eq.s32.totalorder %s14, 1
      %p31 = por %p29, %p30
      %p32 = scmp.ne.s32.totalorder %s24, %s27
      %p33 = scmp.eq.s32.totalorder %s14, 0
      %p34 = por %p32, %p33
      %p35 = scmp.ne.s32.totalorder %s24, %s27
      %p36 = scmp.eq.s32.totalorder %s19, 1
      %p37 = por %p35, %p36
      %p38 = scmp.ne.s32.totalorder %s27, %s28
      %p39 = scmp.eq.s32.totalorder %s19, 0
      %p40 = por %p38, %p39
      %p41 = scmp.ne.s32.totalorder %s27, %s28
      %p42 = scmp.eq.s32.totalorder %s20, 1
      %p43 = por %p41, %p42
      %p45 = scmp.ne.s32.totalorder %s28, %s44
      %p46 = scmp.eq.s32.totalorder %s20, 0
      %p47 = por %p45, %p46
      %s49 = sadd.s32 %s48, 1
      %p52 = scmp.eq.s32.totalorder %s14, 1
      %p53 = scmp.ne.s32.totalorder %s48, %s50
      %p54 = scmp.eq.s32.totalorder %s14, 0
      %p55 = por %p53, %p54
      %p56 = scmp.ne.s32.totalorder %s48, %s50
      %p57 = scmp.eq.s32.totalorder %s19, 1
      %p58 = por %p56, %p57
      %p59 = scmp.ne.s32.totalorder %s50, %s51
      %p60 = scmp.eq.s32.totalorder %s19, 0
      %p61 = por %p59, %p60
      %p62 = scmp.ne.s32.totalorder %s50, %s51
      %p63 = scmp.eq.s32.totalorder %s20, 1
      %p64 = por %p62, %p63
      %p66 = scmp.ne.s32.totalorder %s51, %s65
      %p67 = scmp.eq.s32.totalorder %s20, 0
      %p68 = por %p66, %p67
      %s70 = sadd.s32 %s69, 1
      %p73 = scmp.eq.s32.totalorder %s14, 1
      %p74 = scmp.ne.s32.totalorder %s69, %s71
      %p75 = scmp.eq.s32.totalorder %s14, 0
      %p76 = por %p74, %p75
      %p77 = scmp.ne.s32.totalorder %s69, %s71
      %p78 = scmp.eq.s32.totalorder %s19, 1
      %p79 = por %p77, %p78
      %p80 = scmp.ne.s32.totalorder %s71, %s72
      %p81 = scmp.eq.s32.totalorder %s19, 0
      %p82 = por %p80, %p81
      %p83 = scmp.ne.s32.totalorder %s71, %s72
      %p84 = scmp.eq.s32.totalorder %s20, 1
      %p85 = por %p83, %p84
      %p87 = scmp.ne.s32.totalorder %s72, %s86
      %p88 = scmp.eq.s32.totalorder %s20, 0
      %p89 = por %p87, %p88
      %s91 = sadd.s32 %s90, 1
      %p94 = scmp.eq.s32.totalorder %s14, 1
      %p95 = scmp.ne.s32.totalorder %s90, %s92
      %p96 = scmp.eq.s32.totalorder %s14, 0
      %p97 = por %p95, %p96
      %p98 = scmp.ne.s32.totalorder %s90, %s92
      %p99 = scmp.eq.s32.totalorder %s19, 1
      %p100 = por %p98, %p99
      %p101 = scmp.ne.s32.totalorder %s92, %s93
      %p102 = scmp.eq.s32.totalorder %s19, 0
      %p103 = por %p101, %p102
      %p104 = scmp.ne.s32.totalorder %s92, %s93
      %p105 = scmp.eq.s32.totalorder %s20, 1
      %p106 = por %p104, %p105
      %p108 = scmp.ne.s32.totalorder %s93, %s107
      %p109 = scmp.eq.s32.totalorder %s20, 0
      %p110 = por %p108, %p109
      %s112 = sadd.s32 %s111, 1
      %p115 = scmp.eq.s32.totalorder %s14, 1
      %p116 = scmp.ne.s32.totalorder %s111, %s113
      %p117 = scmp.eq.s32.totalorder %s14, 0
      %p118 = por %p116, %p117
      %p119 = scmp.ne.s32.totalorder %s111, %s113
      %p120 = scmp.eq.s32.totalorder %s19, 1
      %p121 = por %p119, %p120
      %p122 = scmp.ne.s32.totalorder %s113, %s114
      %p123 = scmp.eq.s32.totalorder %s19, 0
      %p124 = por %p122, %p123
      %p125 = scmp.ne.s32.totalorder %s113, %s114
      %p126 = scmp.eq.s32.totalorder %s20, 1
      %p127 = por %p125, %p126
      %p129 = scmp.ne.s32.totalorder %s114, %s128
      %p130 = scmp.eq.s32.totalorder %s20, 0
      %p131 = por %p129, %p130
      %s132 = ssub.s32 %s14, %s21
      %p133 = scmp.eq.s32.totalorder %s132, 0
      %s135 = sadd.s32 %s134, 1
      %s136 = scalar_select %p133, %s134, %s135
      %p139 = pneg %p133
      %p140 = scmp.eq.s32.totalorder %s14, 1
      %p141 = por %p139, %p140
      %p142 = scmp.ne.s32.totalorder %s134, %s137
      %p143 = scmp.eq.s32.totalorder %s14, 0
      %p144 = por %p142, %p143
      %p145 = scmp.ne.s32.totalorder %s134, %s137
      %p146 = scmp.eq.s32.totalorder %s19, 1
      %p147 = por %p145, %p146
      %p148 = scmp.ne.s32.totalorder %s137, %s138
      %p149 = scmp.eq.s32.totalorder %s19, 0
      %p150 = por %p148, %p149
      %p151 = scmp.ne.s32.totalorder %s137, %s138
      %p152 = scmp.eq.s32.totalorder %s20, 1
      %p153 = por %p151, %p152
      %p155 = scmp.ne.s32.totalorder %s138, %s154
      %p156 = scmp.eq.s32.totalorder %s20, 0
      %p157 = por %p155, %p156
      %p158 = scmp.le.s32.totalorder 1, %s14
      %p159 = scmp.lt.s32.totalorder %s14, 3
      %p160 = pnand %p158, %p159
      %p161 = pneg %p160
      // Predicated region
      $region9: #{tpu_custom_call.1} parent=5 // pred_check
        _
      $region10: #{tpu_custom_call.1} parent=5 // pred_check_branch
        %163 = sbr.rel (%p160) target = $region12
      $region11: #{tpu_custom_call.1} parent=5 // pred_region
        %s164 = ssub.s32 %s14, 1
        // Predicated region
        $region13: #{tpu_custom_call.1} parent=11 // pred_check
          %p165 = pneg %p61
        $region14: #{tpu_custom_call.1} parent=11 // pred_check_branch
          %167 = sbr.rel (%p165) target = $region16
        $region15: #{tpu_custom_call.1} parent=11 // pred_region
          _
        $region16: #{tpu_custom_call.1} parent=11 // pred_fallthru
          _
        // Predicated region
        $region17: #{tpu_custom_call.1} parent=11 // pred_check
          %p168 = pneg %p82
        $region18: #{tpu_custom_call.1} parent=11 // pred_check_branch
          %170 = sbr.rel (%p168) target = $region20
        $region19: #{tpu_custom_call.1} parent=11 // pred_region
          _
        $region20: #{tpu_custom_call.1} parent=11 // pred_fallthru
          _
        // Predicated region
        $region21: #{tpu_custom_call.1} parent=11 // pred_check
          %p171 = pneg %p103
        $region22: #{tpu_custom_call.1} parent=11 // pred_check_branch
          %173 = sbr.rel (%p171) target = $region24
        $region23: #{tpu_custom_call.1} parent=11 // pred_region
          _
        $region24: #{tpu_custom_call.1} parent=11 // pred_fallthru
          _
        // Predicated region
        $region25: #{tpu_custom_call.1} parent=11 // pred_check
          %p174 = pneg %p124
        $region26: #{tpu_custom_call.1} parent=11 // pred_check_branch
          %176 = sbr.rel (%p174) target = $region28
        $region27: #{tpu_custom_call.1} parent=11 // pred_region
          _
        $region28: #{tpu_custom_call.1} parent=11 // pred_fallthru
          _
      $region12: #{tpu_custom_call.1} parent=5 // pred_fallthru
        _
      %p177 = scmp.lt.s32.totalorder %s14, 2
      // Predicated region
      $region29: #{tpu_custom_call.1} parent=5 // pred_check
        %p178 = pneg %p177
      $region30: #{tpu_custom_call.1} parent=5 // pred_check_branch
        %180 = sbr.rel (%p178) target = $region32
      $region31: #{tpu_custom_call.1} parent=5 // pred_region
        // Predicated region
        $region33: #{tpu_custom_call.1} parent=31 // pred_check
          %p181 = pneg %p34
        $region34: #{tpu_custom_call.1} parent=31 // pred_check_branch
          %183 = sbr.rel (%p181) target = $region36
        $region35: #{tpu_custom_call.1} parent=31 // pred_region
          %p184 = scmp.lt.s32.totalorder %s14, 1
          %s185 = scalar_select %p184, %s14, 1
          %s186 = smul.addr %s185, 8
          %s187 = smul.addr %s186, 8
          %s188 = scalar_lea.vmem %s0, %s187
        $region36: #{tpu_custom_call.1} parent=31 // pred_fallthru
          _
      $region32: #{tpu_custom_call.1} parent=5 // pred_fallthru
        _
      %p189 = scmp.le.s32.totalorder 1, %s14
      %p190 = scmp.lt.s32.totalorder %s14, 3
      %p191 = pnand %p189, %p190
      %p192 = pneg %p191
      // Predicated region
      $region37: #{tpu_custom_call.1} parent=5 // pred_check
        _
      $region38: #{tpu_custom_call.1} parent=5 // pred_check_branch
        %194 = sbr.rel (%p191) target = $region40
      $region39: #{tpu_custom_call.1} parent=5 // pred_region
        %s195 = ssub.s32 %s14, 1
        %p196 = scmp.lt.s32.totalorder %s19, 1
        %s197 = scalar_select %p196, %s19, 1
        %s198 = smul.addr %s197, 8
        %s199 = smul.addr %s198, 8
        %s200 = scalar_lea.vmem %s0, %s199
        %p201 = pneg %p40
        %p202 = pneg %p37
        %p203 = pneg %p61
        %p204 = pneg %p58
        %p205 = pneg %p82
        %p206 = pneg %p79
        %p207 = pneg %p103
        %p208 = pneg %p100
        %p209 = pneg %p124
        %p210 = pneg %p121
        %p211 = pneg %p150
        %p212 = pneg %p147
        %s213 = sand.u32 %s137, 1
        %s214 = scalar_lea.sflag [#allocation3], %s213
        %s215 = sand.u32 %s137, 1
        %s216 = smul.addr %s215, 64
        %s217 = scalar_lea.vmem [#allocation2], %s216
        %p218 = scmp.lt.s32.totalorder %s19, 1
        %s219 = scalar_select %p218, %s19, 1
        %s220 = smul.addr %s219, 8
        %s221 = smul.addr %s220, 8
        %s222 = scalar_lea.vmem %s0, %s221
        %v223 = vld [vmem:[%s222] sm:$0xff]
        %v224 = vld [vmem:[%s222 + $0x8] sm:$0xff]
        %v225 = vld [vmem:[%s222 + $0x10] sm:$0xff]
        %v226 = vld [vmem:[%s222 + $0x18] sm:$0xff]
        %v227 = vld [vmem:[%s222 + $0x20] sm:$0xff]
        %v228 = vld [vmem:[%s222 + $0x28] sm:$0xff]
        %v229 = vld [vmem:[%s222 + $0x30] sm:$0xff]
        %v230 = vld [vmem:[%s222 + $0x38] sm:$0xff]
        %v231 = vld [vmem:[%s1] sm:$0xff]
        %v232 = vld [vmem:[%s1 + $0x8] sm:$0xff]
        %v233 = vld [vmem:[%s1 + $0x10] sm:$0xff]
        %v234 = vld [vmem:[%s1 + $0x18] sm:$0xff]
        %v235 = vld [vmem:[%s1 + $0x20] sm:$0xff]
        %v236 = vld [vmem:[%s1 + $0x28] sm:$0xff]
        %v237 = vld [vmem:[%s1 + $0x30] sm:$0xff]
        %v238 = vld [vmem:[%s1 + $0x38] sm:$0xff]
        %v239 = vld [vmem:[%s2] sm:$0xff]
        %v240 = vld [vmem:[%s2 + $0x8] sm:$0xff]
        %v241 = vld [vmem:[%s2 + $0x10] sm:$0xff]
        %v242 = vld [vmem:[%s2 + $0x18] sm:$0xff]
        %v243 = vld [vmem:[%s2 + $0x20] sm:$0xff]
        %v244 = vld [vmem:[%s2 + $0x28] sm:$0xff]
        %v245 = vld [vmem:[%s2 + $0x30] sm:$0xff]
        %v246 = vld [vmem:[%s2 + $0x38] sm:$0xff]
        %248 = vset.pattern.permute.xlu0 0
        %249 = vperm.xlu0 %248, %v239
        %v250 = vpop.permute.xlu0 %249
        %253 = vset.pattern.permute.xlu0 0
        %254 = vperm.xlu0 %253, %v240
        %v255 = vpop.permute.xlu0 %254
        %258 = vset.pattern.permute.xlu0 0
        %259 = vperm.xlu0 %258, %v241
        %v260 = vpop.permute.xlu0 %259
        %263 = vset.pattern.permute.xlu0 0
        %264 = vperm.xlu0 %263, %v242
        %v265 = vpop.permute.xlu0 %264
        %268 = vset.pattern.permute.xlu0 0
        %269 = vperm.xlu0 %268, %v243
        %v270 = vpop.permute.xlu0 %269
        %273 = vset.pattern.permute.xlu0 0
        %274 = vperm.xlu0 %273, %v244
        %v275 = vpop.permute.xlu0 %274
        %278 = vset.pattern.permute.xlu0 0
        %279 = vperm.xlu0 %278, %v245
        %v280 = vpop.permute.xlu0 %279
        %283 = vset.pattern.permute.xlu0 0
        %284 = vperm.xlu0 %283, %v246
        %v285 = vpop.permute.xlu0 %284
        %vm287 = vcmask 261120
        %v289 = vsel %vm287, %v231, 0
        %v292 = vsel %vm287, %v232, 0
        %v295 = vsel %vm287, %v233, 0
        %v298 = vsel %vm287, %v234, 0
        %v301 = vsel %vm287, %v235, 0
        %v304 = vsel %vm287, %v236, 0
        %v307 = vsel %vm287, %v237, 0
        %v310 = vsel %vm287, %v238, 0
        %312 = vmatprep.subr.mxu0 %v224
        %313 = vmatpush1.msra.mxu0 %v223
        %314 = vmatprep.subr.mxu0 %v226
        %315 = vmatpush1.msra.mxu0 %v225
        %316 = vmatprep.subr.mxu0 %v228
        %317 = vmatpush1.msra.mxu0 %v227
        %318 = vmatprep.subr.mxu0 %v230
        %319 = vmatpush1.msra.mxu0 %v229
        %320 = vmatprep.subr.mxu0 0.0
        %321 = vmatpush1.msra.mxu0 0.0
        %322 = vmatprep.subr.mxu0 0.0
        %323 = vmatpush1.msra.mxu0 0.0
        %324 = vmatprep.subr.mxu0 0.0
        %325 = vmatpush1.msra.mxu0 0.0
        %326 = vmatprep.subr.mxu0 0.0
        %327 = vmatpush1.msra.mxu0 0.0
        %328 = vmatprep.subr.mxu0 0.0
        %329 = vmatpush1.msra.mxu0 0.0
        %330 = vmatprep.subr.mxu0 0.0
        %331 = vmatpush1.msra.mxu0 0.0
        %332 = vmatprep.subr.mxu0 0.0
        %333 = vmatpush1.msra.mxu0 0.0
        %334 = vmatprep.subr.mxu0 0.0
        %335 = vmatpush1.msra.mxu0 0.0
        %336 = vmatprep.subr.mxu0 0.0
        %337 = vmatpush1.msra.mxu0 0.0
        %338 = vmatprep.subr.mxu0 0.0
        %339 = vmatpush1.msra.mxu0 0.0
        %340 = vmatprep.subr.mxu0 0.0
        %341 = vmatpush1.msra.mxu0 0.0
        %342 = vmatprep.subr.mxu0 0.0
        %343 = vmatpush1.msra.mxu0 0.0
        %344 = vmatprep.subr.mxu0 0.0
        %345 = vmatpush1.msra.mxu0 0.0
        %346 = vmatprep.subr.mxu0 0.0
        %347 = vmatpush1.msra.mxu0 0.0
        %348 = vmatprep.subr.mxu0 0.0
        %349 = vmatpush1.msra.mxu0 0.0
        %350 = vmatprep.subr.mxu0 0.0
        %351 = vmatpush1.msra.mxu0 0.0
        %352 = vmatprep.subr.mxu0 0.0
        %353 = vmatpush1.msra.mxu0 0.0
        %354 = vmatprep.subr.mxu0 0.0
        %355 = vmatpush1.msra.mxu0 0.0
        %356 = vmatprep.subr.mxu0 0.0
        %357 = vmatpush1.msra.mxu0 0.0
        %358 = vmatprep.subr.mxu0 0.0
        %359 = vmatpush1.msra.mxu0 0.0
        %360 = vmatprep.subr.mxu0 0.0
        %361 = vmatpush1.msra.mxu0 0.0
        %362 = vmatprep.subr.mxu0 0.0
        %363 = vmatpush1.msra.mxu0 0.0
        %364 = vmatprep.subr.mxu0 0.0
        %365 = vmatpush1.msra.mxu0 0.0
        %366 = vmatprep.subr.mxu0 0.0
        %367 = vmatpush1.msra.mxu0 0.0
        %368 = vmatprep.subr.mxu0 0.0
        %369 = vmatpush1.msra.mxu0 0.0
        %370 = vmatprep.subr.mxu0 0.0
        %371 = vmatpush1.msra.mxu0 0.0
        %372 = vmatprep.subr.mxu0 0.0
        %373 = vmatpush1.msra.mxu0 0.0
        %374 = vmatprep.subr.mxu0 0.0
        %375 = vmatpush1.msra.mxu0 0.0
        %376 = vmatprep.mubr.f32.mxu0 0.0
        %377 = vmatmul.mubr.f32.gmra.mrb[0].mxu0 %v289
        %v378 = vpop.f32.mrb[0].mxu0
        %v379 = vadd.f32 %v250, %v378
        %v380 = vpop.f32.mrb[0].mxu0
        %v381 = vadd.f32 %v250, %v380
        %382 = vmatprep.mubr.f32.mxu0 0.0
        %383 = vmatmul.mubr.f32.gmra.mrb[0].mxu0 %v292
        %v384 = vpop.f32.mrb[0].mxu0
        %v385 = vadd.f32 %v255, %v384
        %v386 = vpop.f32.mrb[0].mxu0
        %v387 = vadd.f32 %v255, %v386
        %388 = vmatprep.mubr.f32.mxu0 0.0
        %389 = vmatmul.mubr.f32.gmra.mrb[0].mxu0 %v295
        %v390 = vpop.f32.mrb[0].mxu0
        %v391 = vadd.f32 %v260, %v390
        %v392 = vpop.f32.mrb[0].mxu0
        %v393 = vadd.f32 %v260, %v392
        %394 = vmatprep.mubr.f32.mxu0 0.0
        %395 = vmatmul.mubr.f32.gmra.mrb[0].mxu0 %v298
        %v396 = vpop.f32.mrb[0].mxu0
        %v397 = vadd.f32 %v265, %v396
        %v398 = vpop.f32.mrb[0].mxu0
        %v399 = vadd.f32 %v265, %v398
        %400 = vmatprep.mubr.f32.mxu0 0.0
        %401 = vmatmul.mubr.f32.gmra.mrb[0].mxu0 %v301
        %v402 = vpop.f32.mrb[0].mxu0
        %v403 = vadd.f32 %v270, %v402
        %v404 = vpop.f32.mrb[0].mxu0
        %v405 = vadd.f32 %v270, %v404
        %406 = vmatprep.mubr.f32.mxu0 0.0
        %407 = vmatmul.mubr.f32.gmra.mrb[0].mxu0 %v304
        %v408 = vpop.f32.mrb[0].mxu0
        %v409 = vadd.f32 %v275, %v408
        %v410 = vpop.f32.mrb[0].mxu0
        %v411 = vadd.f32 %v275, %v410
        %412 = vmatprep.mubr.f32.mxu0 0.0
        %413 = vmatmul.mubr.f32.gmra.mrb[0].mxu0 %v307
        %v414 = vpop.f32.mrb[0].mxu0
        %v415 = vadd.f32 %v280, %v414
        %v416 = vpop.f32.mrb[0].mxu0
        %v417 = vadd.f32 %v280, %v416
        %418 = vmatprep.mubr.f32.mxu0 0.0
        %419 = vmatmul.mubr.f32.gmra.mrb[0].mxu0 %v310
        %v420 = vpop.f32.mrb[0].mxu0
        %v421 = vadd.f32 %v285, %v420
        %v422 = vpop.f32.mrb[0].mxu0
        %v423 = vadd.f32 %v285, %v422
        %424 = vdwg.mxu0
        %v425 = vmax.f32 %v403, %v409
        %v426 = vrot.slane %v425, 4
        %v427 = vmax.f32 %v425, %v426
        %v428 = vrot.slane %v427, 2
        %v429 = vmax.f32 %v427, %v428
        %v430 = vrot.slane %v429, 1
        %v431 = vmax.f32 %v429, %v430
        %v432 = vmax.f32 %v405, %v411
        %v433 = vrot.slane %v432, 4
        %v434 = vmax.f32 %v432, %v433
        %v435 = vrot.slane %v434, 2
        %v436 = vmax.f32 %v434, %v435
        %v437 = vrot.slane %v436, 1
        %v438 = vmax.f32 %v436, %v437
        %v439 = vsub.f32 %v403, %v431
        %v440 = vsub.f32 %v405, %v438
        %v441 = vsub.f32 %v409, %v431
        %v442 = vsub.f32 %v411, %v438
        %v443 = vmul.f32 %v439, 1.442695
        %v444 = vpow.pop %v443
        %v445 = vmul.f32 %v440, 1.442695
        %v446 = vpow.pop %v445
        %v447 = vmul.f32 %v441, 1.442695
        %v448 = vpow.pop %v447
        %v449 = vmul.f32 %v442, 1.442695
        %v450 = vpow.pop %v449
        %v451 = vadd.f32 %v444, %v448
        %v452 = vrot.slane %v451, 4
        %v453 = vadd.f32 %v451, %v452
        %v454 = vrot.slane %v453, 2
        %v455 = vadd.f32 %v453, %v454
        %v456 = vrot.slane %v455, 1
        %v457 = vadd.f32 %v455, %v456
        %v458 = vadd.f32 %v446, %v450
        %v459 = vrot.slane %v458, 4
        %v460 = vadd.f32 %v458, %v459
        %v461 = vrot.slane %v460, 2
        %v462 = vadd.f32 %v460, %v461
        %v463 = vrot.slane %v462, 1
        %v464 = vadd.f32 %v462, %v463
        %v465 = vrcp.pop %v457
        %v466 = vrcp.pop %v464
        %v467 = vmul.f32 %v444, %v465
        %v468 = vmul.f32 %v446, %v466
        %v469 = vmul.f32 %v448, %v465
        %v470 = vmul.f32 %v450, %v466
        %v471 = vmax.f32 %v415, %v421
        %v472 = vrot.slane %v471, 4
        %v473 = vmax.f32 %v471, %v472
        %v474 = vrot.slane %v473, 2
        %v475 = vmax.f32 %v473, %v474
        %v476 = vrot.slane %v475, 1
        %v477 = vmax.f32 %v475, %v476
        %v478 = vmax.f32 %v417, %v423
        %v479 = vrot.slane %v478, 4
        %v480 = vmax.f32 %v478, %v479
        %v481 = vrot.slane %v480, 2
        %v482 = vmax.f32 %v480, %v481
        %v483 = vrot.slane %v482, 1
        %v484 = vmax.f32 %v482, %v483
        %v485 = vsub.f32 %v415, %v477
        %v486 = vsub.f32 %v417, %v484
        %v487 = vsub.f32 %v421, %v477
        %v488 = vsub.f32 %v423, %v484
        %v489 = vmul.f32 %v485, 1.442695
        %v490 = vpow.pop %v489
        %v491 = vmul.f32 %v486, 1.442695
        %v492 = vpow.pop %v491
        %v493 = vmul.f32 %v487, 1.442695
        %v494 = vpow.pop %v493
        %v495 = vmul.f32 %v488, 1.442695
        %v496 = vpow.pop %v495
        %v497 = vadd.f32 %v490, %v494
        %v498 = vrot.slane %v497, 4
        %v499 = vadd.f32 %v497, %v498
        %v500 = vrot.slane %v499, 2
        %v501 = vadd.f32 %v499, %v500
        %v502 = vrot.slane %v501, 1
        %v503 = vadd.f32 %v501, %v502
        %v504 = vadd.f32 %v492, %v496
        %v505 = vrot.slane %v504, 4
        %v506 = vadd.f32 %v504, %v505
        %v507 = vrot.slane %v506, 2
        %v508 = vadd.f32 %v506, %v507
        %v509 = vrot.slane %v508, 1
        %v510 = vadd.f32 %v508, %v509
        %v511 = vrcp.pop %v503
        %v512 = vrcp.pop %v510
        %v513 = vmul.f32 %v490, %v511
        %v514 = vmul.f32 %v492, %v512
        %v515 = vmul.f32 %v494, %v511
        %v516 = vmul.f32 %v496, %v512
        %517 = vmatprep.subr.mxu0 %v468
        %518 = vmatpush1.xpose.msra.mxu0 %v467
        %519 = vmatprep.subr.mxu0 %v470
        %520 = vmatpush1.xpose.msra.mxu0 %v469
        %521 = vmatprep.subr.mxu0 0.0
        %522 = vmatpush1.xpose.msra.mxu0 0.0
        %523 = vmatprep.subr.mxu0 0.0
        %524 = vmatpush1.xpose.msra.mxu0 0.0
        %525 = vmatprep.subr.mxu0 0.0
        %526 = vmatpush1.xpose.msra.mxu0 0.0
        %527 = vmatprep.subr.mxu0 0.0
        %528 = vmatpush1.xpose.msra.mxu0 0.0
        %529 = vmatprep.subr.mxu0 0.0
        %530 = vmatpush1.xpose.msra.mxu0 0.0
        %531 = vmatprep.subr.mxu0 0.0
        %532 = vmatpush1.xpose.msra.mxu0 0.0
        %533 = vmatprep.subr.mxu0 0.0
        %534 = vmatpush1.xpose.msra.mxu0 0.0
        %535 = vmatprep.subr.mxu0 0.0
        %536 = vmatpush1.xpose.msra.mxu0 0.0
        %537 = vmatprep.subr.mxu0 0.0
        %538 = vmatpush1.xpose.msra.mxu0 0.0
        %539 = vmatprep.subr.mxu0 0.0
        %540 = vmatpush1.xpose.msra.mxu0 0.0
        %541 = vmatprep.subr.mxu0 0.0
        %542 = vmatpush1.xpose.msra.mxu0 0.0
        %543 = vmatprep.subr.mxu0 0.0
        %544 = vmatpush1.xpose.msra.mxu0 0.0
        %545 = vmatprep.subr.mxu0 0.0
        %546 = vmatpush1.xpose.msra.mxu0 0.0
        %547 = vmatprep.subr.mxu0 0.0
        %548 = vmatpush1.xpose.msra.mxu0 0.0
        %549 = vmatprep.subr.mxu0 0.0
        %550 = vmatpush1.xpose.msra.mxu0 0.0
        %551 = vmatprep.subr.mxu0 0.0
        %552 = vmatpush1.xpose.msra.mxu0 0.0
        %553 = vmatprep.subr.mxu0 0.0
        %554 = vmatpush1.xpose.msra.mxu0 0.0
        %555 = vmatprep.subr.mxu0 0.0
        %556 = vmatpush1.xpose.msra.mxu0 0.0
        %557 = vmatprep.subr.mxu0 0.0
        %558 = vmatpush1.xpose.msra.mxu0 0.0
        %559 = vmatprep.subr.mxu0 0.0
        %560 = vmatpush1.xpose.msra.mxu0 0.0
        %561 = vmatprep.subr.mxu0 0.0
        %562 = vmatpush1.xpose.msra.mxu0 0.0
        %563 = vmatprep.subr.mxu0 0.0
        %564 = vmatpush1.xpose.msra.mxu0 0.0
        %565 = vmatprep.subr.mxu0 0.0
        %566 = vmatpush1.xpose.msra.mxu0 0.0
        %567 = vmatprep.subr.mxu0 0.0
        %568 = vmatpush1.xpose.msra.mxu0 0.0
        %569 = vmatprep.subr.mxu0 0.0
        %570 = vmatpush1.xpose.msra.mxu0 0.0
        %571 = vmatprep.subr.mxu0 0.0
        %572 = vmatpush1.xpose.msra.mxu0 0.0
        %573 = vmatprep.subr.mxu0 0.0
        %574 = vmatpush1.xpose.msra.mxu0 0.0
        %575 = vmatprep.subr.mxu0 0.0
        %576 = vmatpush1.xpose.msra.mxu0 0.0
        %577 = vmatprep.subr.mxu0 0.0
        %578 = vmatpush1.xpose.msra.mxu0 0.0
        %579 = vmatprep.subr.mxu0 0.0
        %580 = vmatpush1.xpose.msra.mxu0 0.0
        %581 = vmatprep.mubr.f32.mxu0 %v381
        %582 = vmatmul.mubr.f32.gmra.mrb[0].mxu0 %v379
        %v583 = vpop.f32.mrb[0].mxu0
        %v584 = vadd.f32 0.0, %v583
        %v585 = vpop.f32.mrb[0].mxu0
        %586 = vmatprep.mubr.f32.mxu0 %v387
        %587 = vmatmul.mubr.f32.gmra.mrb[0].mxu0 %v385
        %v588 = vpop.f32.mrb[0].mxu0
        %v589 = vadd.f32 0.0, %v588
        %v590 = vpop.f32.mrb[0].mxu0
        %591 = vmatprep.mubr.f32.mxu0 %v393
        %592 = vmatmul.mubr.f32.gmra.mrb[0].mxu0 %v391
        %v593 = vpop.f32.mrb[0].mxu0
        %v594 = vadd.f32 0.0, %v593
        %v595 = vpop.f32.mrb[0].mxu0
        %596 = vmatprep.mubr.f32.mxu0 %v399
        %597 = vmatmul.mubr.f32.gmra.mrb[0].mxu0 %v397
        %v598 = vpop.f32.mrb[0].mxu0
        %v599 = vadd.f32 0.0, %v598
        %v600 = vpop.f32.mrb[0].mxu0
        %601 = vdwg.mxu0
        %vm602 = vcmask 130048
        %v604 = vsel %vm602, %v584, 0
        %v607 = vsel %vm602, %v589, 0
        %v610 = vsel %vm602, %v594, 0
        %v613 = vsel %vm602, %v599, 0
        %615 = vmatprep.subr.mxu0 %v514
        %616 = vmatpush1.msra.mxu0 %v513
        %617 = vmatprep.subr.mxu0 %v516
        %618 = vmatpush1.msra.mxu0 %v515
        %619 = vmatprep.subr.mxu0 0.0
        %620 = vmatpush1.msra.mxu0 0.0
        %621 = vmatprep.subr.mxu0 0.0
        %622 = vmatpush1.msra.mxu0 0.0
        %623 = vmatprep.subr.mxu0 0.0
        %624 = vmatpush1.msra.mxu0 0.0
        %625 = vmatprep.subr.mxu0 0.0
        %626 = vmatpush1.msra.mxu0 0.0
        %627 = vmatprep.subr.mxu0 0.0
        %628 = vmatpush1.msra.mxu0 0.0
        %629 = vmatprep.subr.mxu0 0.0
        %630 = vmatpush1.msra.mxu0 0.0
        %631 = vmatprep.subr.mxu0 0.0
        %632 = vmatpush1.msra.mxu0 0.0
        %633 = vmatprep.subr.mxu0 0.0
        %634 = vmatpush1.msra.mxu0 0.0
        %635 = vmatprep.subr.mxu0 0.0
        %636 = vmatpush1.msra.mxu0 0.0
        %637 = vmatprep.subr.mxu0 0.0
        %638 = vmatpush1.msra.mxu0 0.0
        %639 = vmatprep.subr.mxu0 0.0
        %640 = vmatpush1.msra.mxu0 0.0
        %641 = vmatprep.subr.mxu0 0.0
        %642 = vmatpush1.msra.mxu0 0.0
        %643 = vmatprep.subr.mxu0 0.0
        %644 = vmatpush1.msra.mxu0 0.0
        %645 = vmatprep.subr.mxu0 0.0
        %646 = vmatpush1.msra.mxu0 0.0
        %647 = vmatprep.subr.mxu0 0.0
        %648 = vmatpush1.msra.mxu0 0.0
        %649 = vmatprep.subr.mxu0 0.0
        %650 = vmatpush1.msra.mxu0 0.0
        %651 = vmatprep.subr.mxu0 0.0
        %652 = vmatpush1.msra.mxu0 0.0
        %653 = vmatprep.subr.mxu0 0.0
        %654 = vmatpush1.msra.mxu0 0.0
        %655 = vmatprep.subr.mxu0 0.0
        %656 = vmatpush1.msra.mxu0 0.0
        %657 = vmatprep.subr.mxu0 0.0
        %658 = vmatpush1.msra.mxu0 0.0
        %659 = vmatprep.subr.mxu0 0.0
        %660 = vmatpush1.msra.mxu0 0.0
        %661 = vmatprep.subr.mxu0 0.0
        %662 = vmatpush1.msra.mxu0 0.0
        %663 = vmatprep.subr.mxu0 0.0
        %664 = vmatpush1.msra.mxu0 0.0
        %665 = vmatprep.subr.mxu0 0.0
        %666 = vmatpush1.msra.mxu0 0.0
        %667 = vmatprep.subr.mxu0 0.0
        %668 = vmatpush1.msra.mxu0 0.0
        %669 = vmatprep.subr.mxu0 0.0
        %670 = vmatpush1.msra.mxu0 0.0
        %671 = vmatprep.subr.mxu0 0.0
        %672 = vmatpush1.msra.mxu0 0.0
        %673 = vmatprep.subr.mxu0 0.0
        %674 = vmatpush1.msra.mxu0 0.0
        %675 = vmatprep.subr.mxu0 0.0
        %676 = vmatpush1.msra.mxu0 0.0
        %677 = vmatprep.subr.mxu0 0.0
        %678 = vmatpush1.msra.mxu0 0.0
        %679 = vmatprep.mubr.f32.mxu0 0.0
        %680 = vmatmul.mubr.f32.gmra.mrb[0].mxu0 %v604
        %v681 = vpop.f32.mrb[0].mxu0
        %v682 = vadd.f32 0.0, %v681
        %v683 = vpop.f32.mrb[0].mxu0
        %v684 = vadd.f32 0.0, %v683
        %685 = vmatprep.mubr.f32.mxu0 0.0
        %686 = vmatmul.mubr.f32.gmra.mrb[0].mxu0 %v607
        %v687 = vpop.f32.mrb[0].mxu0
        %v688 = vadd.f32 0.0, %v687
        %v689 = vpop.f32.mrb[0].mxu0
        %v690 = vadd.f32 0.0, %v689
        %691 = vmatprep.mubr.f32.mxu0 0.0
        %692 = vmatmul.mubr.f32.gmra.mrb[0].mxu0 %v610
        %v693 = vpop.f32.mrb[0].mxu0
        %v694 = vadd.f32 0.0, %v693
        %v695 = vpop.f32.mrb[0].mxu0
        %v696 = vadd.f32 0.0, %v695
        %697 = vmatprep.mubr.f32.mxu0 0.0
        %698 = vmatmul.mubr.f32.gmra.mrb[0].mxu0 %v613
        %v699 = vpop.f32.mrb[0].mxu0
        %v700 = vadd.f32 0.0, %v699
        %v701 = vpop.f32.mrb[0].mxu0
        %v702 = vadd.f32 0.0, %v701
        %703 = vdwg.mxu0
        %v704 = vld [vmem:[%s3] sm:$0xff]
        %v705 = vld [vmem:[%s3 + $0x8] sm:$0xff]
        %v706 = vld [vmem:[%s3 + $0x10] sm:$0xff]
        %v707 = vld [vmem:[%s3 + $0x18] sm:$0xff]
        %v708 = vld [vmem:[%s4] sm:$0xff]
        %v709 = vld [vmem:[%s4 + $0x8] sm:$0xff]
        %v710 = vld [vmem:[%s4 + $0x10] sm:$0xff]
        %v711 = vld [vmem:[%s4 + $0x18] sm:$0xff]
        %713 = vset.pattern.permute.xlu0 0
        %714 = vperm.xlu0 %713, %v708
        %v715 = vpop.permute.xlu0 %714
        %718 = vset.pattern.permute.xlu0 0
        %719 = vperm.xlu0 %718, %v709
        %v720 = vpop.permute.xlu0 %719
        %723 = vset.pattern.permute.xlu0 0
        %724 = vperm.xlu0 %723, %v710
        %v725 = vpop.permute.xlu0 %724
        %728 = vset.pattern.permute.xlu0 0
        %729 = vperm.xlu0 %728, %v711
        %v730 = vpop.permute.xlu0 %729
        %v733 = vsel %vm287, %v704, 0
        %v736 = vsel %vm287, %v705, 0
        %v739 = vsel %vm287, %v706, 0
        %v742 = vsel %vm287, %v707, 0
        %744 = vmatprep.subr.mxu0 %v684
        %745 = vmatpush1.msra.mxu0 %v682
        %746 = vmatprep.subr.mxu0 %v690
        %747 = vmatpush1.msra.mxu0 %v688
        %748 = vmatprep.subr.mxu0 %v696
        %749 = vmatpush1.msra.mxu0 %v694
        %750 = vmatprep.subr.mxu0 %v702
        %751 = vmatpush1.msra.mxu0 %v700
        %752 = vmatprep.subr.mxu0 0.0
        %753 = vmatpush1.msra.mxu0 0.0
        %754 = vmatprep.subr.mxu0 0.0
        %755 = vmatpush1.msra.mxu0 0.0
        %756 = vmatprep.subr.mxu0 0.0
        %757 = vmatpush1.msra.mxu0 0.0
        %758 = vmatprep.subr.mxu0 0.0
        %759 = vmatpush1.msra.mxu0 0.0
        %760 = vmatprep.subr.mxu0 0.0
        %761 = vmatpush1.msra.mxu0 0.0
        %762 = vmatprep.subr.mxu0 0.0
        %763 = vmatpush1.msra.mxu0 0.0
        %764 = vmatprep.subr.mxu0 0.0
        %765 = vmatpush1.msra.mxu0 0.0
        %766 = vmatprep.subr.mxu0 0.0
        %767 = vmatpush1.msra.mxu0 0.0
        %768 = vmatprep.subr.mxu0 0.0
        %769 = vmatpush1.msra.mxu0 0.0
        %770 = vmatprep.subr.mxu0 0.0
        %771 = vmatpush1.msra.mxu0 0.0
        %772 = vmatprep.subr.mxu0 0.0
        %773 = vmatpush1.msra.mxu0 0.0
        %774 = vmatprep.subr.mxu0 0.0
        %775 = vmatpush1.msra.mxu0 0.0
        %776 = vmatprep.subr.mxu0 0.0
        %777 = vmatpush1.msra.mxu0 0.0
        %778 = vmatprep.subr.mxu0 0.0
        %779 = vmatpush1.msra.mxu0 0.0
        %780 = vmatprep.subr.mxu0 0.0
        %781 = vmatpush1.msra.mxu0 0.0
        %782 = vmatprep.subr.mxu0 0.0
        %783 = vmatpush1.msra.mxu0 0.0
        %784 = vmatprep.subr.mxu0 0.0
        %785 = vmatpush1.msra.mxu0 0.0
        %786 = vmatprep.subr.mxu0 0.0
        %787 = vmatpush1.msra.mxu0 0.0
        %788 = vmatprep.subr.mxu0 0.0
        %789 = vmatpush1.msra.mxu0 0.0
        %790 = vmatprep.subr.mxu0 0.0
        %791 = vmatpush1.msra.mxu0 0.0
        %792 = vmatprep.subr.mxu0 0.0
        %793 = vmatpush1.msra.mxu0 0.0
        %794 = vmatprep.subr.mxu0 0.0
        %795 = vmatpush1.msra.mxu0 0.0
        %796 = vmatprep.subr.mxu0 0.0
        %797 = vmatpush1.msra.mxu0 0.0
        %798 = vmatprep.subr.mxu0 0.0
        %799 = vmatpush1.msra.mxu0 0.0
        %800 = vmatprep.subr.mxu0 0.0
        %801 = vmatpush1.msra.mxu0 0.0
        %802 = vmatprep.subr.mxu0 0.0
        %803 = vmatpush1.msra.mxu0 0.0
        %804 = vmatprep.subr.mxu0 0.0
        %805 = vmatpush1.msra.mxu0 0.0
        %806 = vmatprep.subr.mxu0 0.0
        %807 = vmatpush1.msra.mxu0 0.0
        %808 = vmatprep.mubr.f32.mxu0 0.0
        %809 = vmatmul.mubr.f32.gmra.mrb[0].mxu0 %v733
        %v810 = vpop.f32.mrb[0].mxu0
        %v811 = vadd.f32 %v715, %v810
        %v812 = vpop.f32.mrb[0].mxu0
        %v813 = vadd.f32 %v715, %v812
        %814 = vmatprep.mubr.f32.mxu0 0.0
        %815 = vmatmul.mubr.f32.gmra.mrb[0].mxu0 %v736
        %v816 = vpop.f32.mrb[0].mxu0
        %v817 = vadd.f32 %v720, %v816
        %v818 = vpop.f32.mrb[0].mxu0
        %v819 = vadd.f32 %v720, %v818
        %820 = vmatprep.mubr.f32.mxu0 0.0
        %821 = vmatmul.mubr.f32.gmra.mrb[0].mxu0 %v739
        %v822 = vpop.f32.mrb[0].mxu0
        %v823 = vadd.f32 %v725, %v822
        %v824 = vpop.f32.mrb[0].mxu0
        %v825 = vadd.f32 %v725, %v824
        %826 = vmatprep.mubr.f32.mxu0 0.0
        %827 = vmatmul.mubr.f32.gmra.mrb[0].mxu0 %v742
        %v828 = vpop.f32.mrb[0].mxu0
        %v829 = vadd.f32 %v730, %v828
        %v830 = vpop.f32.mrb[0].mxu0
        %v831 = vadd.f32 %v730, %v830
        %832 = vdwg.mxu0
        %833 = vst [vmem:[%s217] sm:$0xff] %v811
        %834 = vst [vmem:[%s217 + $0x8] sm:$0xff] %v813
        %835 = vst [vmem:[%s217 + $0x10] sm:$0xff] %v817
        %836 = vst [vmem:[%s217 + $0x18] sm:$0xff] %v819
        %837 = vst [vmem:[%s217 + $0x20] sm:$0xff] %v823
        %838 = vst [vmem:[%s217 + $0x28] sm:$0xff] %v825
        %839 = vst [vmem:[%s217 + $0x30] sm:$0xff] %v829
        %840 = vst [vmem:[%s217 + $0x38] sm:$0xff] %v831
        %s841 = sand.u32 %s137, 1
        %s842 = scalar_lea.sflag [#allocation3], %s841
        %s843 = sand.u32 %s137, 1
        %s844 = smul.addr %s843, 64
        %s845 = scalar_lea.vmem [#allocation2], %s844
        // Predicated region
        $region41: #{tpu_custom_call.1} parent=39 // pred_check
          %p846 = pneg %p147
        $region42: #{tpu_custom_call.1} parent=39 // pred_check_branch
          %848 = sbr.rel (%p846) target = $region44
        $region43: #{tpu_custom_call.1} parent=39 // pred_region
          %s850 = ssub.s32 1024, 1024
          %851 = vsyncadd %s842, %s850
          %s852 = smul.addr %s19, 8
          %s853 = smul.addr %s852, 128
          %s854 = scalar_lea.hbm %s5, %s853
          %s855 = sshll.u32 %s845, 4
          %s856 = int_to_ptr.vmem [resolvable:$true] %s855
          %861 = dma.vmem_to_hbm [thread:$0]  %s856, 1024, %s854, %s842, 256, 256, 16
        $region44: #{tpu_custom_call.1} parent=39 // pred_fallthru
          _
      $region40: #{tpu_custom_call.1} parent=5 // pred_fallthru
        _
      %p862 = scmp.le.s32.totalorder 2, %s14
      // Predicated region
      $region45: #{tpu_custom_call.1} parent=5 // pred_check
        %p863 = pneg %p862
      $region46: #{tpu_custom_call.1} parent=5 // pred_check_branch
        %865 = sbr.rel (%p863) target = $region48
      $region47: #{tpu_custom_call.1} parent=5 // pred_region
        %s866 = ssub.s32 %s14, 2
        // Predicated region
        $region49: #{tpu_custom_call.1} parent=47 // pred_check
          %p867 = pneg %p153
        $region50: #{tpu_custom_call.1} parent=47 // pred_check_branch
          %869 = sbr.rel (%p867) target = $region52
        $region51: #{tpu_custom_call.1} parent=47 // pred_region
          %s870 = sand.u32 %s138, 1
          %s871 = scalar_lea.sflag [#allocation3], %s870
          %s872 = sand.u32 %s138, 1
          %s873 = smul.addr %s872, 64
          %s874 = scalar_lea.vmem [#allocation2], %s873
          %875 = dma.done %s871, 1024
        $region52: #{tpu_custom_call.1} parent=47 // pred_fallthru
          _
      $region48: #{tpu_custom_call.1} parent=5 // pred_fallthru
        _
    $region6: #{tpu_custom_call.1} parent=1 // loop_footer
      %s18 = sadd.s32 1, %s14
    $region7: #{tpu_custom_call.1} parent=1 // loop_footer_branch
      %13 = sbr.rel target = $region3
    $region8: #{tpu_custom_call.1} parent=1 // loop_exit
      _
    %876 = vsyncpa [#allocation3], 1
    %s877 = scalar_lea.sflag [#allocation3], 1
    %878 = vsyncpa %s877, 1

</llo_original>
